<compile_context>
chip_gen: v6e
topology: v6e:2x2x1
jax: 0.10.0
libtpu: 0.0.40
codegen_flags: <defaults>
</compile_context>

<pallas_src>
from functools import partial

import jax
import jax.numpy as jnp
from jax.experimental import pallas as pl
from jax.experimental.pallas import tpu as pltpu


def _round_up(n, m):
    return ((n + m - 1) // m) * m


def dqn_kernel(x_ref, w1_ref, b1_ref, w2_ref, b2_ref, w3_ref, b3_ref, o_ref):
    # fc1 + ReLU: fully f32 (K = state_size = 8 is tiny; preserves observation precision).
    h1 = jnp.dot(x_ref[...], w1_ref[...], preferred_element_type=jnp.float32)
    h1 = jnp.maximum(h1 + b1_ref[...], 0.0).astype(jnp.bfloat16)
    # fc2 + ReLU: bf16 operands, f32 accumulate, bf16 intermediate.
    h2 = jnp.dot(h1, w2_ref[...], preferred_element_type=jnp.float32)
    h2 = jnp.maximum(h2 + b2_ref[...], 0.0).astype(jnp.bfloat16)
    # fc3 (no activation): bf16 operands, f32 accumulate, f32 output (true width A=4).
    out = jnp.dot(h2, w3_ref[...], preferred_element_type=jnp.float32) + b3_ref[...]
    o_ref[...] = out.astype(o_ref.dtype)


@partial(jax.jit, static_argnames=("block_b",))
def dqn_forward(x, params, *, block_b=4096):
    """Fused DQN forward.  x: (B, state_size) f32; params stored (in, out) / (1, out) f32."""
    w1, b1, w2, b2, w3, b3 = params
    B, S = x.shape
    H1 = w1.shape[1]
    H2 = w2.shape[1]
    A = w3.shape[1]

    # w1 stays f32 (fc1 is computed in f32); w2/w3 are bf16 MXU operands; biases stay f32
    # (added to the f32 accumulators). All feature dims are left unpadded (block last dim ==
    # full array dim is legal for 8/64/64/4).
    w2b = w2.astype(jnp.bfloat16)
    w3b = w3.astype(jnp.bfloat16)

    # Batch tiling: <= block_b rows per tile, multiple of 16, and >= 2 grid steps when there
    # are enough rows (so v7x can shard the "parallel" axis over both TensorCores). Choosing
    # the tile as cdiv(B, n_steps) keeps ragged-batch padding under one tile.
    n_steps = max(1, -(-B // block_b))
    if B > 16:
        n_steps = max(n_steps, 2)
    tb = _round_up(max(1, -(-B // n_steps)), 16)
    b_pad = _round_up(B, tb)
    xp = x if b_pad == B else jnp.pad(x, ((0, b_pad - B), (0, 0)))

    grid = (b_pad // tb,)
    resident = lambda i: (0, 0)  # same block every step -> params stay VMEM-resident

    out = pl.pallas_call(
        dqn_kernel,
        out_shape=jax.ShapeDtypeStruct((b_pad, A), jnp.float32),
        grid=grid,
        in_specs=[
            pl.BlockSpec((tb, S), lambda i: (i, 0)),   # streamed activations (f32)
            pl.BlockSpec((S, H1), resident),           # w1 f32
            pl.BlockSpec((1, H1), resident),           # b1 f32
            pl.BlockSpec((H1, H2), resident),          # w2 bf16
            pl.BlockSpec((1, H2), resident),           # b2 f32
            pl.BlockSpec((H2, A), resident),           # w3 bf16
            pl.BlockSpec((1, A), resident),            # b3 f32
        ],
        out_specs=pl.BlockSpec((tb, A), lambda i: (i, 0)),
        compiler_params=pltpu.CompilerParams(
            dimension_semantics=("parallel",),  # shard batch tiles across TCs on v7x
        ),
    )(xp, w1, b1, w2b, b2, w3b, b3)

    if b_pad != B:
        out = out[:B]
    return out


def init_linear_params(key, in_features, out_features):
    # Deterministic init mirroring torch.nn.Linear's default:
    # U(-1/sqrt(in_features), 1/sqrt(in_features)) for both weight and bias.
    kw, kb = jax.random.split(key)
    bound = 1.0 / jnp.sqrt(jnp.float32(in_features))
    # stored as (in, out) so the kernel can do x @ W directly
    w = jax.random.uniform(kw, (in_features, out_features), jnp.float32, -bound, bound)
    b = jax.random.uniform(kb, (1, out_features), jnp.float32, -bound, bound)
    return w, b


def reference_forward_f32(x, params):
    """Original (PyTorch-equivalent) full-f32 forward."""
    w1, b1, w2, b2, w3, b3 = params
    h1 = jnp.maximum(x @ w1 + b1, 0.0)
    h2 = jnp.maximum(h1 @ w2 + b2, 0.0)
    return h2 @ w3 + b3


def reference_forward_mixed(x, params):
    """Reference matching the kernel's precision: f32 fc1, bf16 operands for fc2/fc3."""
    w1, b1, w2, b2, w3, b3 = params
    h1 = jnp.maximum(x @ w1 + b1, 0.0).astype(jnp.bfloat16)
    h2 = jnp.dot(h1, w2.astype(jnp.bfloat16), preferred_element_type=jnp.float32) + b2
    h2 = jnp.maximum(h2, 0.0).astype(jnp.bfloat16)
    return jnp.dot(h2, w3.astype(jnp.bfloat16), preferred_element_type=jnp.float32) + b3


if __name__ == "__main__":
    # Small shapes consistent with the module's forward:
    # state_size=8, fc1_units=64, fc2_units=64, action_size=4.
    batch = 8
    state_size = 8
    fc1_units = 64
    fc2_units = 64
    action_size = 4

    key = jax.random.PRNGKey(0)
    k_x, k1, k2, k3, k_big = jax.random.split(key, 5)

    x = jax.random.normal(k_x, (batch, state_size), jnp.float32)
    w1, b1 = init_linear_params(k1, state_size, fc1_units)
    w2, b2 = init_linear_params(k2, fc1_units, fc2_units)
    w3, b3 = init_linear_params(k3, fc2_units, action_size)
    params = (w1, b1, w2, b2, w3, b3)

    # --- small batch (single grid step) ---
    out = jax.block_until_ready(dqn_forward(x, params))
    assert out.shape == (batch, action_size)
    ref_mixed = reference_forward_mixed(x, params)
    ref_f32 = reference_forward_f32(x, params)
    assert jnp.allclose(out, ref_mixed, atol=1e-4, rtol=1e-4)
    assert jnp.allclose(out, ref_f32, atol=3e-2, rtol=3e-2)

    # --- larger, ragged batch (exercises multi-step grid, 2 TC sharding on v7x, tail pad) ---
    big_batch = 2050  # not a multiple of the tile
    x_big = jax.random.normal(k_big, (big_batch, state_size), jnp.float32)
    out_big = jax.block_until_ready(dqn_forward(x_big, params))
    assert out_big.shape == (big_batch, action_size)
    ref_big = reference_forward_mixed(x_big, params)
    assert jnp.allclose(out_big, ref_big, atol=1e-4, rtol=1e-4)

    print("KERNEL_OK")
</pallas_src>

<mosaic_0001>
module attributes {stable_mosaic.version = 11 : i64} {
  func.func @dqn_kernel(%arg0: i32, %arg1: memref<16x8xf32, #tpu.memory_space<vmem>>, %arg2: memref<8x64xf32, #tpu.memory_space<vmem>>, %arg3: memref<1x64xf32, #tpu.memory_space<vmem>>, %arg4: memref<64x64xbf16, #tpu.memory_space<vmem>>, %arg5: memref<1x64xf32, #tpu.memory_space<vmem>>, %arg6: memref<64x4xbf16, #tpu.memory_space<vmem>>, %arg7: memref<1x4xf32, #tpu.memory_space<vmem>>, %arg8: memref<16x4xf32, #tpu.memory_space<vmem>>) attributes {dimension_semantics = [#tpu.dimension_semantics<parallel>], iteration_bounds = array<i64: 1>, scalar_prefetch = 0 : i64, scratch_operands = 0 : i64, tpu.core_type = #tpu.core_type<tc>, window_params = [{transform_indices = @transform_0, window_bounds = array<i64: 16, 8>}, {pipeline_mode = #tpu.pipeline_mode<synchronous>, transform_indices = @transform_1, window_bounds = array<i64: 8, 64>}, {pipeline_mode = #tpu.pipeline_mode<synchronous>, transform_indices = @transform_2, window_bounds = array<i64: 1, 64>}, {pipeline_mode = #tpu.pipeline_mode<synchronous>, transform_indices = @transform_3, window_bounds = array<i64: 64, 64>}, {pipeline_mode = #tpu.pipeline_mode<synchronous>, transform_indices = @transform_4, window_bounds = array<i64: 1, 64>}, {pipeline_mode = #tpu.pipeline_mode<synchronous>, transform_indices = @transform_5, window_bounds = array<i64: 64, 4>}, {pipeline_mode = #tpu.pipeline_mode<synchronous>, transform_indices = @transform_6, window_bounds = array<i64: 1, 4>}, {transform_indices = @transform_7, window_bounds = array<i64: 16, 4>}]} {
    %c0 = arith.constant 0 : index
    %c0_0 = arith.constant 0 : index
    %0 = vector.load %arg1[%c0, %c0_0] : memref<16x8xf32, #tpu.memory_space<vmem>>, vector<16x8xf32>
    %c0_1 = arith.constant 0 : index
    %c0_2 = arith.constant 0 : index
    %1 = vector.load %arg2[%c0_1, %c0_2] : memref<8x64xf32, #tpu.memory_space<vmem>>, vector<8x64xf32>
    %cst = arith.constant dense<0.000000e+00> : vector<16x64xf32>
    %2 = tpu.matmul %0, %1, %cst {dimension_numbers = #tpu.dot_dimension_numbers<[1], [0], [0], [1], [0, 0, 1, 1], [], []>} : vector<16x8xf32>, vector<8x64xf32>, vector<16x64xf32> -> vector<16x64xf32>
    %c0_3 = arith.constant 0 : index
    %c0_4 = arith.constant 0 : index
    %3 = vector.load %arg3[%c0_3, %c0_4] : memref<1x64xf32, #tpu.memory_space<vmem>>, vector<1x64xf32>
    %4 = vector.broadcast %3 : vector<1x64xf32> to vector<16x64xf32>
    %5 = arith.addf %2, %4 : vector<16x64xf32>
    %cst_5 = arith.constant 0.000000e+00 : f32
    %6 = vector.broadcast %cst_5 : f32 to vector<16x64xf32>
    %7 = arith.maximumf %5, %6 : vector<16x64xf32>
    %8 = arith.truncf %7 : vector<16x64xf32> to vector<16x64xbf16>
    %c0_6 = arith.constant 0 : index
    %c0_7 = arith.constant 0 : index
    %9 = vector.load %arg4[%c0_6, %c0_7] : memref<64x64xbf16, #tpu.memory_space<vmem>>, vector<64x64xbf16>
    %cst_8 = arith.constant dense<0.000000e+00> : vector<16x64xf32>
    %10 = tpu.matmul %8, %9, %cst_8 {dimension_numbers = #tpu.dot_dimension_numbers<[1], [0], [0], [1], [0, 0, 1, 1], [], []>} : vector<16x64xbf16>, vector<64x64xbf16>, vector<16x64xf32> -> vector<16x64xf32>
    %c0_9 = arith.constant 0 : index
    %c0_10 = arith.constant 0 : index
    %11 = vector.load %arg5[%c0_9, %c0_10] : memref<1x64xf32, #tpu.memory_space<vmem>>, vector<1x64xf32>
    %12 = vector.broadcast %11 : vector<1x64xf32> to vector<16x64xf32>
    %13 = arith.addf %10, %12 : vector<16x64xf32>
    %cst_11 = arith.constant 0.000000e+00 : f32
    %14 = vector.broadcast %cst_11 : f32 to vector<16x64xf32>
    %15 = arith.maximumf %13, %14 : vector<16x64xf32>
    %16 = arith.truncf %15 : vector<16x64xf32> to vector<16x64xbf16>
    %c0_12 = arith.constant 0 : index
    %c0_13 = arith.constant 0 : index
    %17 = vector.load %arg6[%c0_12, %c0_13] : memref<64x4xbf16, #tpu.memory_space<vmem>>, vector<64x4xbf16>
    %cst_14 = arith.constant dense<0.000000e+00> : vector<16x4xf32>
    %18 = tpu.matmul %16, %17, %cst_14 {dimension_numbers = #tpu.dot_dimension_numbers<[1], [0], [0], [1], [0, 0, 1, 1], [], []>} : vector<16x64xbf16>, vector<64x4xbf16>, vector<16x4xf32> -> vector<16x4xf32>
    %c0_15 = arith.constant 0 : index
    %c0_16 = arith.constant 0 : index
    %19 = vector.load %arg7[%c0_15, %c0_16] : memref<1x4xf32, #tpu.memory_space<vmem>>, vector<1x4xf32>
    %20 = vector.broadcast %19 : vector<1x4xf32> to vector<16x4xf32>
    %21 = arith.addf %18, %20 : vector<16x4xf32>
    %c0_17 = arith.constant 0 : index
    %c0_18 = arith.constant 0 : index
    %22 = vector.load %arg8[%c0_17, %c0_18] : memref<16x4xf32, #tpu.memory_space<vmem>>, vector<16x4xf32>
    tpu.vector_store %arg8[%c0_17, %c0_18], %21 {strides = array<i32>} : memref<16x4xf32, #tpu.memory_space<vmem>>, vector<16x4xf32>,
    return
  }
  func.func @transform_0(%arg0: i32) -> (i32, i32) {
    %c0_i32 = arith.constant 0 : i32
    %c0_i32_0 = arith.constant 0 : i32
    return %arg0, %c0_i32 : i32, i32
  }
  func.func @transform_1(%arg0: i32) -> (i32, i32) {
    %c0_i32 = arith.constant 0 : i32
    %c0_i32_0 = arith.constant 0 : i32
    %c0_i32_1 = arith.constant 0 : i32
    return %c0_i32, %c0_i32_0 : i32, i32
  }
  func.func @transform_2(%arg0: i32) -> (i32, i32) {
    %c0_i32 = arith.constant 0 : i32
    %c0_i32_0 = arith.constant 0 : i32
    %c0_i32_1 = arith.constant 0 : i32
    return %c0_i32, %c0_i32_0 : i32, i32
  }
  func.func @transform_3(%arg0: i32) -> (i32, i32) {
    %c0_i32 = arith.constant 0 : i32
    %c0_i32_0 = arith.constant 0 : i32
    %c0_i32_1 = arith.constant 0 : i32
    return %c0_i32, %c0_i32_0 : i32, i32
  }
  func.func @transform_4(%arg0: i32) -> (i32, i32) {
    %c0_i32 = arith.constant 0 : i32
    %c0_i32_0 = arith.constant 0 : i32
    %c0_i32_1 = arith.constant 0 : i32
    return %c0_i32, %c0_i32_0 : i32, i32
  }
  func.func @transform_5(%arg0: i32) -> (i32, i32) {
    %c0_i32 = arith.constant 0 : i32
    %c0_i32_0 = arith.constant 0 : i32
    %c0_i32_1 = arith.constant 0 : i32
    return %c0_i32, %c0_i32_0 : i32, i32
  }
  func.func @transform_6(%arg0: i32) -> (i32, i32) {
    %c0_i32 = arith.constant 0 : i32
    %c0_i32_0 = arith.constant 0 : i32
    %c0_i32_1 = arith.constant 0 : i32
    return %c0_i32, %c0_i32_0 : i32, i32
  }
  func.func @transform_7(%arg0: i32) -> (i32, i32) {
    %c0_i32 = arith.constant 0 : i32
    %c0_i32_0 = arith.constant 0 : i32
    return %arg0, %c0_i32 : i32, i32
  }
}

</mosaic_0001>

<llo_original>
// kernel: dqn_forward.1
$region0: #{dqn_forward.1}
  #allocation0 [shape = 'u32[]', space=smem, size = 0x4, offset = 0x4, fixed_abs, tag = 'smem constant byte address 0x4 - core index']
  #allocation1 [shape = 'u32[144,128]{1,0:T(1,128)}', space=vmem, size = 0x12000, scoped, tag = 'internal scratch']
  %s0 = inlined_call_operand.vmem [shape: f32[16,8], index: 0, kind: input, shape index: {}]
  %s1 = inlined_call_operand.vmem [shape: f32[8,64], index: 1, kind: input, shape index: {}]
  %s2 = inlined_call_operand.vmem [shape: f32[1,64], index: 2, kind: input, shape index: {}]
  %s3 = inlined_call_operand.vmem [shape: bf16[64,64], index: 3, kind: input, shape index: {}]
  %s4 = inlined_call_operand.vmem [shape: f32[1,64], index: 4, kind: input, shape index: {}]
  %s5 = inlined_call_operand.vmem [shape: bf16[64,4], index: 5, kind: input, shape index: {}]
  %s6 = inlined_call_operand.vmem [shape: f32[1,4], index: 6, kind: input, shape index: {}]
  %s7 = inlined_call_operand.vmem [shape: f32[16,4], index: 7, kind: output, shape index: {}]
  %s8 = sld [smem:[#allocation0]]
  $region38: #{dqn_forward.1} parent=0
    _
  %s10 = ssub.s32 1, %s8
  %s11 = scalar_select 0, %s10, %s8
  // Predicated region
  $region2: #{dqn_forward.1} parent=0 // pred_check
    _
  $region3: #{dqn_forward.1} parent=0 // pred_check_branch
    %13 = sbr.rel (0) target = $region5
  $region4: #{dqn_forward.1} parent=0 // pred_region
    _
  $region5: #{dqn_forward.1} parent=0 // pred_fallthru
    _
  // Predicated region
  $region6: #{dqn_forward.1} parent=0 // pred_check
    _
  $region7: #{dqn_forward.1} parent=0 // pred_check_branch
    %15 = sbr.rel (0) target = $region9
  $region8: #{dqn_forward.1} parent=0 // pred_region
    _
  $region9: #{dqn_forward.1} parent=0 // pred_fallthru
    _
  // Predicated region
  $region10: #{dqn_forward.1} parent=0 // pred_check
    _
  $region11: #{dqn_forward.1} parent=0 // pred_check_branch
    %17 = sbr.rel (0) target = $region13
  $region12: #{dqn_forward.1} parent=0 // pred_region
    _
  $region13: #{dqn_forward.1} parent=0 // pred_fallthru
    _
  // Predicated region
  $region14: #{dqn_forward.1} parent=0 // pred_check
    _
  $region15: #{dqn_forward.1} parent=0 // pred_check_branch
    %19 = sbr.rel (0) target = $region17
  $region16: #{dqn_forward.1} parent=0 // pred_region
    _
  $region17: #{dqn_forward.1} parent=0 // pred_fallthru
    _
  // Predicated region
  $region18: #{dqn_forward.1} parent=0 // pred_check
    _
  $region19: #{dqn_forward.1} parent=0 // pred_check_branch
    %21 = sbr.rel (0) target = $region21
  $region20: #{dqn_forward.1} parent=0 // pred_region
    _
  $region21: #{dqn_forward.1} parent=0 // pred_fallthru
    _
  // Predicated region
  $region22: #{dqn_forward.1} parent=0 // pred_check
    _
  $region23: #{dqn_forward.1} parent=0 // pred_check_branch
    %23 = sbr.rel (0) target = $region25
  $region24: #{dqn_forward.1} parent=0 // pred_region
    _
  $region25: #{dqn_forward.1} parent=0 // pred_fallthru
    _
  // Predicated region
  $region26: #{dqn_forward.1} parent=0 // pred_check
    _
  $region27: #{dqn_forward.1} parent=0 // pred_check_branch
    %25 = sbr.rel (0) target = $region29
  $region28: #{dqn_forward.1} parent=0 // pred_region
    _
  $region29: #{dqn_forward.1} parent=0 // pred_fallthru
    _
  %v27 = vld [vmem:[%s0] sm:$0xff]
  %v28 = vld [vmem:[%s0 + $0x8] sm:$0xff]
  %v29 = vld [vmem:[%s1] sm:$0xff]
  %v30 = vld [vmem:[%s2] sm:$0x1]
  %v32 = vlaneseq
  %v33 = vshrl.u32 %v32, 7
  %v34 = vsub.s32 0, %v33
  %v35 = vrot.slane %v30, %v34
  %vm37 = vcmask 64512
  %v39 = vsel %vm37, %v27, 0
  %v42 = vsel %vm37, %v28, 0
  %44 = vmatprep.subr.mxu0 0.0
  %45 = vmatpush1.msra.mxu0 0.0
  %46 = vmatprep.subr.mxu0 0.0
  %47 = vmatpush1.msra.mxu0 0.0
  %48 = vmatprep.subr.mxu0 0.0
  %49 = vmatpush1.msra.mxu0 0.0
  %50 = vmatprep.subr.mxu0 0.0
  %51 = vmatpush1.msra.mxu0 0.0
  %52 = vmatprep.subr.mxu0 0.0
  %53 = vmatpush1.msra.mxu0 0.0
  %54 = vmatprep.subr.mxu0 0.0
  %55 = vmatpush1.msra.mxu0 0.0
  %56 = vmatprep.subr.mxu0 0.0
  %57 = vmatpush1.msra.mxu0 0.0
  %58 = vmatprep.subr.mxu0 0.0
  %59 = vmatpush1.msra.mxu0 0.0
  %60 = vmatprep.subr.mxu0 0.0
  %61 = vmatpush1.msra.mxu0 0.0
  %62 = vmatprep.subr.mxu0 0.0
  %63 = vmatpush1.msra.mxu0 0.0
  %64 = vmatprep.subr.mxu0 0.0
  %65 = vmatpush1.msra.mxu0 0.0
  %66 = vmatprep.subr.mxu0 0.0
  %67 = vmatpush1.msra.mxu0 0.0
  %68 = vmatprep.subr.mxu0 0.0
  %69 = vmatpush1.msra.mxu0 0.0
  %70 = vmatprep.subr.mxu0 0.0
  %71 = vmatpush1.msra.mxu0 0.0
  %72 = vmatprep.subr.mxu0 0.0
  %73 = vmatpush1.msra.mxu0 0.0
  %74 = vmatprep.subr.mxu0 0.0
  %75 = vmatpush1.msra.mxu0 %v29
  %76 = vmatprep.subr.mxu0 0.0
  %77 = vmatpush2.msra.mxu0 0.0
  %78 = vmatprep.subr.mxu0 0.0
  %79 = vmatpush2.msra.mxu0 0.0
  %80 = vmatprep.subr.mxu0 0.0
  %81 = vmatpush2.msra.mxu0 0.0
  %82 = vmatprep.subr.mxu0 0.0
  %83 = vmatpush2.msra.mxu0 0.0
  %84 = vmatprep.subr.mxu0 0.0
  %85 = vmatpush2.msra.mxu0 0.0
  %86 = vmatprep.subr.mxu0 0.0
  %87 = vmatpush2.msra.mxu0 0.0
  %88 = vmatprep.subr.mxu0 0.0
  %89 = vmatpush2.msra.mxu0 0.0
  %90 = vmatprep.subr.mxu0 0.0
  %91 = vmatpush2.msra.mxu0 0.0
  %92 = vmatprep.subr.mxu0 0.0
  %93 = vmatpush2.msra.mxu0 0.0
  %94 = vmatprep.subr.mxu0 0.0
  %95 = vmatpush2.msra.mxu0 0.0
  %96 = vmatprep.subr.mxu0 0.0
  %97 = vmatpush2.msra.mxu0 0.0
  %98 = vmatprep.subr.mxu0 0.0
  %99 = vmatpush2.msra.mxu0 0.0
  %100 = vmatprep.subr.mxu0 0.0
  %101 = vmatpush2.msra.mxu0 0.0
  %102 = vmatprep.subr.mxu0 0.0
  %103 = vmatpush2.msra.mxu0 0.0
  %104 = vmatprep.subr.mxu0 0.0
  %105 = vmatpush2.msra.mxu0 0.0
  %106 = vmatprep.subr.mxu0 0.0
  %107 = vmatpush2.msra.mxu0 0.0
  %108 = vmatprep.mubr.f32.mxu0 0.0
  %109 = vmatmul.mubr.f32.gmra.mxu0 %v39
  %v110 = vpop.f32.mrf.mxu0
  %v111 = vadd.f32 %v35, %v110
  %v112 = vpop.f32.mrf.mxu0
  %113 = vmatprep.mubr.f32.mxu0 0.0
  %114 = vmatmul.mubr.f32.gmra.mxu0 %v42
  %v115 = vpop.f32.mrf.mxu0
  %v116 = vadd.f32 %v35, %v115
  %v117 = vpop.f32.mrf.mxu0
  %118 = vdwg.mxu0
  %v119 = vmax.f32 %v111, 0.0
  %v120 = vmax.f32 %v116, 0.0
  %v121 = vpack.c.bf16 %v120, %v119
  %v122 = vld [vmem:[%s3] sm:$0xf]
  %v123 = vld [vmem:[%s3 + $0x4] sm:$0xf]
  %v124 = vld [vmem:[%s3 + $0x8] sm:$0xf]
  %v125 = vld [vmem:[%s3 + $0xc] sm:$0xf]
  %v126 = vld [vmem:[%s3 + $0x10] sm:$0xf]
  %v127 = vld [vmem:[%s3 + $0x14] sm:$0xf]
  %v128 = vld [vmem:[%s3 + $0x18] sm:$0xf]
  %v129 = vld [vmem:[%s3 + $0x1c] sm:$0xf]
  %v130 = vld [vmem:[%s4] sm:$0x1]
  %v132 = vlaneseq
  %v133 = vshrl.u32 %v132, 7
  %v134 = vsub.s32 0, %v133
  %v135 = vrot.slane %v130, %v134
  %v145 = vunpack.c.l.b16 %v122
  %v146 = vunpack.c.l.b16 %v123
  %v147 = vunpack.c.l.b16 %v124
  %v148 = vunpack.c.l.b16 %v125
  %v149 = vunpack.c.l.b16 %v126
  %v150 = vunpack.c.l.b16 %v127
  %v151 = vunpack.c.l.b16 %v128
  %v152 = vunpack.c.l.b16 %v129
  %v153 = vpack.c.b16 %v146, %v145
  %v154 = vpack.c.b16 %v148, %v147
  %v155 = vpack.c.b16 %v150, %v149
  %v156 = vpack.c.b16 %v152, %v151
  %vm161 = vcmask 523264
  %v163 = vsel %vm161, %v121, 0
  %165 = vmatprep.subr.bf16.mxu0 0
  %166 = vmatpush1.bf16.msra.mxu0 0
  %167 = vmatprep.subr.bf16.mxu0 0
  %168 = vmatpush1.bf16.msra.mxu0 0
  %169 = vmatprep.subr.bf16.mxu0 0
  %170 = vmatpush1.bf16.msra.mxu0 0
  %171 = vmatprep.subr.bf16.mxu0 0
  %172 = vmatpush1.bf16.msra.mxu0 0
  %173 = vmatprep.subr.bf16.mxu0 0
  %174 = vmatpush1.bf16.msra.mxu0 %v156
  %175 = vmatprep.subr.bf16.mxu0 0
  %176 = vmatpush1.bf16.msra.mxu0 %v155
  %177 = vmatprep.subr.bf16.mxu0 0
  %178 = vmatpush1.bf16.msra.mxu0 %v154
  %179 = vmatprep.subr.bf16.mxu0 0
  %180 = vmatpush1.bf16.msra.mxu0 %v153
  %181 = vmatprep.subr.bf16.mxu0 0
  %182 = vmatpush2.bf16.msra.mxu0 0
  %183 = vmatprep.subr.bf16.mxu0 0
  %184 = vmatpush2.bf16.msra.mxu0 0
  %185 = vmatprep.subr.bf16.mxu0 0
  %186 = vmatpush2.bf16.msra.mxu0 0
  %187 = vmatprep.subr.bf16.mxu0 0
  %188 = vmatpush2.bf16.msra.mxu0 0
  %189 = vmatprep.subr.bf16.mxu0 0
  %190 = vmatpush2.bf16.msra.mxu0 0
  %191 = vmatprep.subr.bf16.mxu0 0
  %192 = vmatpush2.bf16.msra.mxu0 0
  %193 = vmatprep.subr.bf16.mxu0 0
  %194 = vmatpush2.bf16.msra.mxu0 0
  %195 = vmatprep.subr.bf16.mxu0 0
  %196 = vmatpush2.bf16.msra.mxu0 0
  %197 = vmatprep.mubr.bf16.mxu0 0
  %198 = vmatmul.mubr.bf16.gmra.mxu0 %v163
  %v199 = vpop.f32.mrf.mxu0
  %v200 = vadd.f32 %v135, %v199
  %v201 = vpop.f32.mrf.mxu0
  %v202 = vpop.f32.mrf.mxu0
  %v203 = vadd.f32 %v135, %v202
  %v204 = vpop.f32.mrf.mxu0
  %205 = vdwg.mxu0
  %v206 = vmax.f32 %v200, 0.0
  %v207 = vmax.f32 %v203, 0.0
  %v208 = vpack.c.bf16 %v207, %v206
  %v209 = vld [vmem:[%s5] sm:$0xf]
  %v210 = vld [vmem:[%s5 + $0x4] sm:$0xf]
  %v211 = vld [vmem:[%s5 + $0x8] sm:$0xf]
  %v212 = vld [vmem:[%s5 + $0xc] sm:$0xf]
  %v213 = vld [vmem:[%s5 + $0x10] sm:$0xf]
  %v214 = vld [vmem:[%s5 + $0x14] sm:$0xf]
  %v215 = vld [vmem:[%s5 + $0x18] sm:$0xf]
  %v216 = vld [vmem:[%s5 + $0x1c] sm:$0xf]
  %v217 = vld [vmem:[%s6] sm:$0x1]
  %v219 = vlaneseq
  %v220 = vshrl.u32 %v219, 7
  %v221 = vsub.s32 0, %v220
  %v222 = vrot.slane %v217, %v221
  %v232 = vunpack.c.l.b16 %v209
  %v233 = vunpack.c.l.b16 %v210
  %v234 = vunpack.c.l.b16 %v211
  %v235 = vunpack.c.l.b16 %v212
  %v236 = vunpack.c.l.b16 %v213
  %v237 = vunpack.c.l.b16 %v214
  %v238 = vunpack.c.l.b16 %v215
  %v239 = vunpack.c.l.b16 %v216
  %v240 = vpack.c.b16 %v233, %v232
  %v241 = vpack.c.b16 %v235, %v234
  %v242 = vpack.c.b16 %v237, %v236
  %v243 = vpack.c.b16 %v239, %v238
  %v249 = vsel %vm161, %v208, 0
  %251 = vmatprep.subr.bf16.mxu0 0
  %252 = vmatpush1.bf16.msra.mxu0 0
  %253 = vmatprep.subr.bf16.mxu0 0
  %254 = vmatpush1.bf16.msra.mxu0 0
  %255 = vmatprep.subr.bf16.mxu0 0
  %256 = vmatpush1.bf16.msra.mxu0 0
  %257 = vmatprep.subr.bf16.mxu0 0
  %258 = vmatpush1.bf16.msra.mxu0 0
  %259 = vmatprep.subr.bf16.mxu0 0
  %260 = vmatpush1.bf16.msra.mxu0 %v243
  %261 = vmatprep.subr.bf16.mxu0 0
  %262 = vmatpush1.bf16.msra.mxu0 %v242
  %263 = vmatprep.subr.bf16.mxu0 0
  %264 = vmatpush1.bf16.msra.mxu0 %v241
  %265 = vmatprep.subr.bf16.mxu0 0
  %266 = vmatpush1.bf16.msra.mxu0 %v240
  %267 = vmatprep.subr.bf16.mxu0 0
  %268 = vmatpush2.bf16.msra.mxu0 0
  %269 = vmatprep.subr.bf16.mxu0 0
  %270 = vmatpush2.bf16.msra.mxu0 0
  %271 = vmatprep.subr.bf16.mxu0 0
  %272 = vmatpush2.bf16.msra.mxu0 0
  %273 = vmatprep.subr.bf16.mxu0 0
  %274 = vmatpush2.bf16.msra.mxu0 0
  %275 = vmatprep.subr.bf16.mxu0 0
  %276 = vmatpush2.bf16.msra.mxu0 0
  %277 = vmatprep.subr.bf16.mxu0 0
  %278 = vmatpush2.bf16.msra.mxu0 0
  %279 = vmatprep.subr.bf16.mxu0 0
  %280 = vmatpush2.bf16.msra.mxu0 0
  %281 = vmatprep.subr.bf16.mxu0 0
  %282 = vmatpush2.bf16.msra.mxu0 0
  %283 = vmatprep.mubr.bf16.mxu0 0
  %284 = vmatmul.mubr.bf16.gmra.mxu0 %v249
  %v285 = vpop.f32.mrf.mxu0
  %v286 = vadd.f32 %v222, %v285
  %v287 = vpop.f32.mrf.mxu0
  %v288 = vpop.f32.mrf.mxu0
  %v289 = vadd.f32 %v222, %v288
  %v290 = vpop.f32.mrf.mxu0
  %291 = vdwg.mxu0
  %vm292 = vcmask 31744
  %293 = vst.msk [vmem:[%s7] sm:$0xff] %vm292, %v286
  %294 = vst.msk [vmem:[%s7 + $0x8] sm:$0xff] %vm292, %v289
  // Predicated region
  $region30: #{dqn_forward.1} parent=0 // pred_check
    _
  $region31: #{dqn_forward.1} parent=0 // pred_check_branch
    %296 = sbr.rel (0) target = $region33
  $region32: #{dqn_forward.1} parent=0 // pred_region
    _
  $region33: #{dqn_forward.1} parent=0 // pred_fallthru
    _
  // Predicated region
  $region34: #{dqn_forward.1} parent=0 // pred_check
    _
  $region35: #{dqn_forward.1} parent=0 // pred_check_branch
    %298 = sbr.rel (0) target = $region37
  $region36: #{dqn_forward.1} parent=0 // pred_region
    _
  $region37: #{dqn_forward.1} parent=0 // pred_fallthru
    _

</llo_original>
